<compile_context>
chip_gen: v6e
topology: v6e:2x2x1
jax: 0.10.0
libtpu: 0.0.40
codegen_flags: <defaults>
</compile_context>

<pallas_src>
import functools

import jax
import jax.numpy as jnp
import numpy as np
from jax.experimental import pallas as pl
from jax.experimental.pallas import tpu as pltpu


def _choose_row_tile(kp):
    """Row-tile size TM: keep each (TM, Kp) f32 temporary at <= 1 MiB so the ~3-4
    live tile-sized temporaries stay a few MiB -- well inside scoped VMEM on every
    generation (v7x is the tightest: 64 MiB physical / 32 MiB scoped default)."""
    max_tile_elems = 256 * 1024
    for tm in (kp, 1024, 512, 256, 128, 64, 32, 16, 8):
        if tm <= kp and kp % tm == 0 and tm * kp <= max_tile_elems:
            return tm
    return 8


def _choose_batch_block(b, kp):
    """Batch elements per grid step: amortize per-step overhead when K is small,
    but keep >= 2 grid steps so both v7x TensorCores stay fed (no-op on v5e/v6e)."""
    want = max(1, (1 << 18) // (kp * kp))  # aim for >= ~256K dist elements per step
    tb = 1
    for cand in range(1, min(b, want) + 1):
        if b % cand == 0 and b // cand >= min(2, b):
            tb = cand
    return tb


def _sor_kernel(pc_ref, pct_ref, val_ref, *, knn_k, k_real, tm):
    """pc_ref: (TB, Kp, 3), pct_ref: (TB, 3, Kp), val_ref: (TB, Kp).

    Per batch element: stream the pairwise-distance matrix in (tm, Kp) row tiles
    (never materialized), keep the running k smallest distances per column as k
    sorted lane-dense (1, Kp) vectors, and emit their mean."""
    tb, kp, _ = pc_ref.shape
    n_tiles = kp // tm
    inf = jnp.float32(jnp.inf)
    # Small iotas, broadcast on the fly (no persistent (K, K) int32 matrices).
    col_l = jax.lax.broadcasted_iota(jnp.int32, (1, kp), 1)       # (1, Kp) lane ids
    local_row = jax.lax.broadcasted_iota(jnp.int32, (tm, 1), 0)   # (tm, 1) sublane ids

    for b in range(tb):                      # static, small batch block
        pc_b = pc_ref.at[b]                  # (Kp, 3) view
        pct_b = pct_ref.at[b]                # (3, Kp) view

        def tile_body(t, run):
            i0 = pl.multiple_of(t * tm, tm) if n_tiles > 1 else 0
            tile = pc_b[pl.ds(i0, tm), :].astype(jnp.float32)     # (tm, 3)

            # dist[i, j] = sum_c (x[i,c] - x[j,c])^2  -- pure VPU, >= 0 by
            # construction (the torch `dist.min() >= -1e-6` assert holds trivially).
            d = None
            for c in range(3):
                diff = tile[:, c:c + 1] - pct_b[c:c + 1, :].astype(jnp.float32)
                sq = diff * diff
                d = sq if d is None else d + sq                   # (tm, Kp)

            row_g = local_row + i0                                # (tm, 1) global rows
            d = jnp.where(row_g == col_l, inf, d)                 # mask self-distance
            if k_real != kp:
                d = jnp.where(row_g >= k_real, inf, d)            # mask padded rows

            # Extract this tile's k smallest per column and merge into the running
            # sorted top-k (compare/swap insertion chain on (1, Kp) vectors).
            run = list(run)
            for step in range(knn_k):
                m = jnp.min(d, axis=0, keepdims=True)             # (1, Kp)
                cand = m
                for j in range(knn_k):
                    lo = jnp.minimum(run[j], cand)
                    cand = jnp.maximum(run[j], cand)
                    run[j] = lo
                if step + 1 < knn_k:
                    # Mask exactly one occurrence of the min (smallest row index)
                    # so duplicated points keep their zero distances (same value
                    # multiset as torch.topk).
                    idx = jnp.min(jnp.where(d == m, row_g, jnp.int32(kp)),
                                  axis=0, keepdims=True)          # (1, Kp)
                    d = jnp.where(row_g == idx, inf, d)
            return tuple(run)

        run0 = tuple(jnp.full((1, kp), inf, jnp.float32) for _ in range(knn_k))
        if n_tiles == 1:
            run = tile_body(0, run0)
        else:
            run = jax.lax.fori_loop(0, n_tiles, tile_body, run0)

        acc = run[0]
        for j in range(1, knn_k):
            acc = acc + run[j]
        # Lane-dense store: Kp is a multiple of 128 -> full unmasked vst.
        val_ref[b:b + 1, :] = acc * jnp.float32(1.0 / knn_k)


@functools.partial(jax.jit, static_argnames=("k", "alpha"))
def _sor_values(x, k, alpha):
    """x: [B, K, 3] float32. Returns (value [B, K] f32, mask [B, K] bool)."""
    B, K, C = x.shape
    kp = ((K + 127) // 128) * 128        # pad point count to a lane-dense multiple of 128
    tb = _choose_batch_block(B, kp)
    nb = B // tb
    tm = _choose_row_tile(kp)

    x_p = x if kp == K else jnp.pad(x, ((0, 0), (0, kp - K), (0, 0)))
    x_blk = x_p.reshape(nb, tb, kp, C)                        # (nb, TB, Kp, 3)
    xt_blk = jnp.swapaxes(x_p, 1, 2).reshape(nb, tb, C, kp)   # (nb, TB, 3, Kp)

    kernel = functools.partial(_sor_kernel, knn_k=k, k_real=K, tm=tm)
    val = pl.pallas_call(
        kernel,
        out_shape=jax.ShapeDtypeStruct((nb, tb, kp), jnp.float32),
        grid_spec=pltpu.PrefetchScalarGridSpec(
            num_scalar_prefetch=0,
            grid=(nb,),
            in_specs=[
                pl.BlockSpec((None, tb, kp, C), lambda i: (i, 0, 0, 0)),
                pl.BlockSpec((None, tb, C, kp), lambda i: (i, 0, 0, 0)),
            ],
            out_specs=pl.BlockSpec((None, tb, kp), lambda i: (i, 0, 0)),
        ),
        compiler_params=pltpu.CompilerParams(
            dimension_semantics=("parallel",),
            # Explicit VMEM budget, valid on every generation (v7x physical is
            # 64 MiB; v5e's scoped default is only 16 MiB).  The kernel's working
            # set is O(tm*kp) by construction, so 32 MiB is ample headroom.
            vmem_limit_bytes=32 * 1024 * 1024,
        ),
    )(x_blk, xt_blk)

    value = val.reshape(B, kp)[:, :K]                 # drop padded columns
    mean = jnp.mean(value, axis=-1)
    std = jnp.std(value, axis=-1, ddof=1)             # unbiased, matches torch.std
    threshold = mean + jnp.float32(alpha) * std
    mask = value <= threshold[:, None]
    return value, mask


def sor_defense(x, k=2, alpha=1.1):
    """x: [B, K, 3]. Returns (list of kept point arrays per batch, value [B,K], mask [B,K])."""
    B, K, C = x.shape
    assert C == 3 and 1 <= k <= K - 1, "need 3-D points and 1 <= k <= K-1"
    value, mask = _sor_values(x, int(k), float(alpha))
    # Ragged per-batch selection: data-dependent output shapes cannot live in a TPU
    # kernel, so this is host glue.  One D2H transfer each for x / mask, then numpy
    # splits (avoids B serial host<->device round trips).
    mask_np = np.asarray(jax.device_get(mask))
    x_np = np.asarray(jax.device_get(x))
    sel_pc = [x_np[i][mask_np[i]] for i in range(B)]
    return sel_pc, value, mask


if __name__ == "__main__":
    knn_k, alpha = 2, 1.1

    def ref_values(xn):
        # float64 numpy reference for the mean-kNN-distance values (same math as torch).
        out = []
        for pc in xn:
            d = ((pc[:, None, :] - pc[None, :, :]) ** 2).sum(-1)
            d_sorted = np.sort(d, axis=-1)
            out.append(d_sorted[:, 1:1 + knn_k].mean(-1))
        return np.stack(out)

    key0, key1 = jax.random.split(jax.random.PRNGKey(0))

    # Shipped-size check: B=2, K=64 (padded to 128 lanes, single row tile).
    x = jax.random.normal(key0, (2, 64, 3), dtype=jnp.float32)
    sel_pc, val, mask = sor_defense(x, k=knn_k, alpha=alpha)
    val = jax.block_until_ready(val)
    mask = jax.block_until_ready(mask)
    np.testing.assert_allclose(np.asarray(val),
                               ref_values(np.asarray(x, np.float64)),
                               rtol=1e-3, atol=1e-4)

    # Larger check exercising K padding (600 -> 640) and the multi-row-tile path.
    x2 = jax.random.normal(key1, (2, 600, 3), dtype=jnp.float32)
    _, val2, _ = sor_defense(x2, k=knn_k, alpha=alpha)
    val2 = jax.block_until_ready(val2)
    np.testing.assert_allclose(np.asarray(val2),
                               ref_values(np.asarray(x2, np.float64)),
                               rtol=1e-3, atol=1e-4)

    print("KERNEL_OK")
</pallas_src>

<mosaic_0001>
module attributes {stable_mosaic.version = 11 : i64} {
  func.func @_sor_kernel(%arg0: i32, %arg1: memref<1x1x128x3xf32, #tpu.memory_space<vmem>>, %arg2: memref<1x1x3x128xf32, #tpu.memory_space<vmem>>, %arg3: memref<1x1x128xf32, #tpu.memory_space<vmem>>) attributes {dimension_semantics = [#tpu.dimension_semantics<parallel>], iteration_bounds = array<i64: 2>, scalar_prefetch = 0 : i64, scratch_operands = 0 : i64, tpu.core_type = #tpu.core_type<tc>, window_params = [{transform_indices = @transform_0, window_bounds = array<i64: 1, 1, 128, 3>}, {transform_indices = @transform_1, window_bounds = array<i64: 1, 1, 3, 128>}, {transform_indices = @transform_2, window_bounds = array<i64: 1, 1, 128>}]} {
    %0 = tpu.iota {dimensions = array<i32: 1>} : vector<1x128xi32>
    %1 = tpu.iota {dimensions = array<i32: 0>} : vector<128x1xi32>
    %cst = arith.constant 0x7F800000 : f32
    %2 = vector.broadcast %cst : f32 to vector<1x128xf32>
    %cst_0 = arith.constant 0x7F800000 : f32
    %3 = vector.broadcast %cst_0 : f32 to vector<1x128xf32>
    %c0_i32 = arith.constant 0 : i32
    %c0_i32_1 = arith.constant 0 : i32
    %c0_i32_2 = arith.constant 0 : i32
    %c0_i32_3 = arith.constant 0 : i32
    %4 = tpu.memref_slice %arg1[%c0_i32, %c0_i32_1, %c0_i32_2, %c0_i32_3] : memref<1x1x128x3xf32, #tpu.memory_space<vmem>> -> memref<1x1x128x3xf32, #tpu.memory_space<vmem>>
    %5 = tpu.memref_squeeze %4 : memref<1x1x128x3xf32, #tpu.memory_space<vmem>> -> memref<128x3xf32, #tpu.memory_space<vmem>>
    %c0 = arith.constant 0 : index
    %c0_4 = arith.constant 0 : index
    %6 = vector.load %5[%c0, %c0_4] : memref<128x3xf32, #tpu.memory_space<vmem>>, vector<128x3xf32>
    %7 = vector.extract_strided_slice %6 {offsets = [0, 0], sizes = [128, 1], strides = [1, 1]} : vector<128x3xf32> to vector<128x1xf32>
    %c0_i32_5 = arith.constant 0 : i32
    %c0_i32_6 = arith.constant 0 : i32
    %c0_i32_7 = arith.constant 0 : i32
    %c0_i32_8 = arith.constant 0 : i32
    %8 = tpu.memref_slice %arg2[%c0_i32_5, %c0_i32_6, %c0_i32_7, %c0_i32_8] : memref<1x1x3x128xf32, #tpu.memory_space<vmem>> -> memref<1x1x3x128xf32, #tpu.memory_space<vmem>>
    %9 = tpu.memref_squeeze %8 : memref<1x1x3x128xf32, #tpu.memory_space<vmem>> -> memref<3x128xf32, #tpu.memory_space<vmem>>
    %c0_9 = arith.constant 0 : index
    %c0_10 = arith.constant 0 : index
    %10 = vector.load %9[%c0_9, %c0_10] : memref<3x128xf32, #tpu.memory_space<vmem>>, vector<1x128xf32>
    %11 = vector.broadcast %7 : vector<128x1xf32> to vector<128x128xf32>
    %12 = vector.broadcast %10 : vector<1x128xf32> to vector<128x128xf32>
    %13 = arith.subf %11, %12 : vector<128x128xf32>
    %14 = arith.mulf %13, %13 : vector<128x128xf32>
    %15 = vector.extract_strided_slice %6 {offsets = [0, 1], sizes = [128, 1], strides = [1, 1]} : vector<128x3xf32> to vector<128x1xf32>
    %c0_i32_11 = arith.constant 0 : i32
    %c0_i32_12 = arith.constant 0 : i32
    %c0_i32_13 = arith.constant 0 : i32
    %c0_i32_14 = arith.constant 0 : i32
    %16 = tpu.memref_slice %arg2[%c0_i32_11, %c0_i32_12, %c0_i32_13, %c0_i32_14] : memref<1x1x3x128xf32, #tpu.memory_space<vmem>> -> memref<1x1x3x128xf32, #tpu.memory_space<vmem>>
    %17 = tpu.memref_squeeze %16 : memref<1x1x3x128xf32, #tpu.memory_space<vmem>> -> memref<3x128xf32, #tpu.memory_space<vmem>>
    %c1 = arith.constant 1 : index
    %c0_15 = arith.constant 0 : index
    %18 = vector.load %17[%c1, %c0_15] : memref<3x128xf32, #tpu.memory_space<vmem>>, vector<1x128xf32>
    %19 = vector.broadcast %15 : vector<128x1xf32> to vector<128x128xf32>
    %20 = vector.broadcast %18 : vector<1x128xf32> to vector<128x128xf32>
    %21 = arith.subf %19, %20 : vector<128x128xf32>
    %22 = arith.mulf %21, %21 : vector<128x128xf32>
    %23 = arith.addf %14, %22 : vector<128x128xf32>
    %24 = vector.extract_strided_slice %6 {offsets = [0, 2], sizes = [128, 1], strides = [1, 1]} : vector<128x3xf32> to vector<128x1xf32>
    %c0_i32_16 = arith.constant 0 : i32
    %c0_i32_17 = arith.constant 0 : i32
    %c0_i32_18 = arith.constant 0 : i32
    %c0_i32_19 = arith.constant 0 : i32
    %25 = tpu.memref_slice %arg2[%c0_i32_16, %c0_i32_17, %c0_i32_18, %c0_i32_19] : memref<1x1x3x128xf32, #tpu.memory_space<vmem>> -> memref<1x1x3x128xf32, #tpu.memory_space<vmem>>
    %26 = tpu.memref_squeeze %25 : memref<1x1x3x128xf32, #tpu.memory_space<vmem>> -> memref<3x128xf32, #tpu.memory_space<vmem>>
    %c2 = arith.constant 2 : index
    %c0_20 = arith.constant 0 : index
    %27 = vector.load %26[%c2, %c0_20] : memref<3x128xf32, #tpu.memory_space<vmem>>, vector<1x128xf32>
    %28 = vector.broadcast %24 : vector<128x1xf32> to vector<128x128xf32>
    %29 = vector.broadcast %27 : vector<1x128xf32> to vector<128x128xf32>
    %30 = arith.subf %28, %29 : vector<128x128xf32>
    %31 = arith.mulf %30, %30 : vector<128x128xf32>
    %32 = arith.addf %23, %31 : vector<128x128xf32>
    %c0_i32_21 = arith.constant 0 : i32
    %33 = vector.broadcast %c0_i32_21 : i32 to vector<128x1xi32>
    %34 = arith.addi %1, %33 : vector<128x1xi32>
    %35 = vector.broadcast %34 : vector<128x1xi32> to vector<128x128xi32>
    %36 = vector.broadcast %0 : vector<1x128xi32> to vector<128x128xi32>
    %37 = arith.cmpi eq, %35, %36 : vector<128x128xi32>
    %cst_22 = arith.constant 0x7F800000 : f32
    %38 = vector.broadcast %cst_22 : f32 to vector<128x128xf32>
    %39 = arith.select %37, %38, %32 : vector<128x128xi1>, vector<128x128xf32>
    %c64_i32 = arith.constant 64 : i32
    %40 = vector.broadcast %c64_i32 : i32 to vector<128x1xi32>
    %41 = arith.cmpi sge, %34, %40 : vector<128x1xi32>
    %cst_23 = arith.constant 0x7F800000 : f32
    %42 = vector.shape_cast %41 : vector<128x1xi1> to vector<128x1xi1>
    %43 = vector.broadcast %42 : vector<128x1xi1> to vector<128x128xi1>
    %44 = vector.broadcast %cst_23 : f32 to vector<128x128xf32>
    %45 = arith.select %43, %44, %39 : vector<128x128xi1>, vector<128x128xf32>
    %cst_24 = arith.constant dense<0x7F800000> : vector<128xf32>
    %46 = vector.multi_reduction <minimumf>, %45, %cst_24 [0] : vector<128x128xf32> to vector<128xf32>
    %47 = vector.shape_cast %46 : vector<128xf32> to vector<1x128xf32>
    %48 = arith.minimumf %2, %47 : vector<1x128xf32>
    %49 = arith.maximumf %2, %47 : vector<1x128xf32>
    %50 = arith.minimumf %3, %49 : vector<1x128xf32>
    %51 = vector.broadcast %47 : vector<1x128xf32> to vector<128x128xf32>
    %52 = arith.cmpf oeq, %45, %51 : vector<128x128xf32>
    %c128_i32 = arith.constant 128 : i32
    %53 = vector.shape_cast %34 : vector<128x1xi32> to vector<128x1xi32>
    %54 = vector.broadcast %53 : vector<128x1xi32> to vector<128x128xi32>
    %55 = vector.broadcast %c128_i32 : i32 to vector<128x128xi32>
    %56 = arith.select %52, %54, %55 : vector<128x128xi1>, vector<128x128xi32>
    %cst_25 = arith.constant dense<2147483647> : vector<128xi32>
    %57 = vector.multi_reduction <minsi>, %56, %cst_25 [0] : vector<128x128xi32> to vector<128xi32>
    %58 = vector.shape_cast %57 : vector<128xi32> to vector<1x128xi32>
    %59 = vector.broadcast %34 : vector<128x1xi32> to vector<128x128xi32>
    %60 = vector.broadcast %58 : vector<1x128xi32> to vector<128x128xi32>
    %61 = arith.cmpi eq, %59, %60 : vector<128x128xi32>
    %cst_26 = arith.constant 0x7F800000 : f32
    %62 = vector.broadcast %cst_26 : f32 to vector<128x128xf32>
    %63 = arith.select %61, %62, %45 : vector<128x128xi1>, vector<128x128xf32>
    %cst_27 = arith.constant dense<0x7F800000> : vector<128xf32>
    %64 = vector.multi_reduction <minimumf>, %63, %cst_27 [0] : vector<128x128xf32> to vector<128xf32>
    %65 = vector.shape_cast %64 : vector<128xf32> to vector<1x128xf32>
    %66 = arith.minimumf %48, %65 : vector<1x128xf32>
    %67 = arith.maximumf %48, %65 : vector<1x128xf32>
    %68 = arith.minimumf %50, %67 : vector<1x128xf32>
    %69 = arith.addf %66, %68 : vector<1x128xf32>
    %cst_28 = arith.constant 5.000000e-01 : f32
    %70 = vector.broadcast %cst_28 : f32 to vector<1x128xf32>
    %71 = arith.mulf %69, %70 : vector<1x128xf32>
    %c0_29 = arith.constant 0 : index
    %c0_30 = arith.constant 0 : index
    %c0_31 = arith.constant 0 : index
    %72 = vector.load %arg3[%c0_29, %c0_30, %c0_31] : memref<1x1x128xf32, #tpu.memory_space<vmem>>, vector<1x1x128xf32>
    %73 = vector.shape_cast %72 : vector<1x1x128xf32> to vector<1x128xf32>
    %74 = vector.shape_cast %71 : vector<1x128xf32> to vector<1x1x128xf32>
    tpu.vector_store %arg3[%c0_29, %c0_30, %c0_31], %74 {strides = array<i32>} : memref<1x1x128xf32, #tpu.memory_space<vmem>>, vector<1x1x128xf32>,
    return
  }
  func.func @transform_0(%arg0: i32) -> (i32, i32, i32, i32) {
    %c0_i32 = arith.constant 0 : i32
    %c0_i32_0 = arith.constant 0 : i32
    %c0_i32_1 = arith.constant 0 : i32
    %c0_i32_2 = arith.constant 0 : i32
    return %arg0, %c0_i32, %c0_i32_0, %c0_i32_1 : i32, i32, i32, i32
  }
  func.func @transform_1(%arg0: i32) -> (i32, i32, i32, i32) {
    %c0_i32 = arith.constant 0 : i32
    %c0_i32_0 = arith.constant 0 : i32
    %c0_i32_1 = arith.constant 0 : i32
    %c0_i32_2 = arith.constant 0 : i32
    return %arg0, %c0_i32, %c0_i32_0, %c0_i32_1 : i32, i32, i32, i32
  }
  func.func @transform_2(%arg0: i32) -> (i32, i32, i32) {
    %c0_i32 = arith.constant 0 : i32
    %c0_i32_0 = arith.constant 0 : i32
    %c0_i32_1 = arith.constant 0 : i32
    return %arg0, %c0_i32, %c0_i32_0 : i32, i32, i32
  }
}

</mosaic_0001>

<llo_original>
// kernel: _sor_values.1
$region0: #{_sor_values.1}
  #allocation0 [shape = 'u32[]', space=smem, size = 0x4, offset = 0x4, fixed_abs, tag = 'smem constant byte address 0x4 - core index']
  #allocation1 [shape = 'u32[144,128]{1,0:T(1,128)}', space=vmem, size = 0x12000, scoped, tag = 'internal scratch']
  %s0 = inlined_call_operand.vmem [shape: f32[2,1,128,3], index: 0, kind: input, shape index: {}]
  %s1 = inlined_call_operand.vmem [shape: f32[2,1,3,128], index: 1, kind: input, shape index: {}]
  %s2 = inlined_call_operand.vmem [shape: f32[2,1,128], index: 2, kind: output, shape index: {}]
  %s3 = sld [smem:[#allocation0]]
  $region41: #{_sor_values.1} parent=0
    _
  %s5 = ssub.s32 1, %s3
  %s6 = scalar_select 0, %s5, %s3
  loop: start=0, step=1, limit=4
  $region2: #{_sor_values.1} parent=0 // loop_pre_header
    _
  $region3: #{_sor_values.1} parent=0 // loop_header
    %s8 = sphi 0, %s12
    %p9 = scmp.ge.s32.totalorder %s8, 4
    %s18 = sphi 0, %s20
    %s21 = sphi 0, %s18
    %s22 = sphi 0, %s21
    %s38 = sphi 0, %s22
    %s44 = sphi 0, %s46
    %s47 = sphi 0, %s44
    %s48 = sphi 0, %s47
    %s64 = sphi 0, %s48
    %s70 = sphi 0, %s72
    %s73 = sphi 0, %s70
    %s74 = sphi 0, %s73
    %s90 = sphi 0, %s74
  $region4: #{_sor_values.1} parent=0 // loop_header_branch
    %11 = sbr.rel (%p9) target = $region8
  $region5: #{_sor_values.1} parent=0 // loop_body
    %s13 = ssub.s32 %s8, 1
    %s14 = ssub.s32 %s8, 2
    %s15 = sadd.s32 %s8, 1
    %s16 = ssub.s32 %s8, %s15
    %p17 = scmp.eq.s32.totalorder %s16, 0
    %s19 = sadd.s32 %s18, 1
    %s20 = scalar_select %p17, %s18, %s19
    %p23 = pneg %p17
    %p24 = scmp.eq.s32.totalorder %s8, 1
    %p25 = por %p23, %p24
    %p26 = scmp.ne.s32.totalorder %s18, %s21
    %p27 = scmp.eq.s32.totalorder %s8, 0
    %p28 = por %p26, %p27
    %p29 = scmp.ne.s32.totalorder %s18, %s21
    %p30 = scmp.eq.s32.totalorder %s13, 1
    %p31 = por %p29, %p30
    %p32 = scmp.ne.s32.totalorder %s21, %s22
    %p33 = scmp.eq.s32.totalorder %s13, 0
    %p34 = por %p32, %p33
    %p35 = scmp.ne.s32.totalorder %s21, %s22
    %p36 = scmp.eq.s32.totalorder %s14, 1
    %p37 = por %p35, %p36
    %p39 = scmp.ne.s32.totalorder %s22, %s38
    %p40 = scmp.eq.s32.totalorder %s14, 0
    %p41 = por %p39, %p40
    %s42 = ssub.s32 %s8, %s15
    %p43 = scmp.eq.s32.totalorder %s42, 0
    %s45 = sadd.s32 %s44, 1
    %s46 = scalar_select %p43, %s44, %s45
    %p49 = pneg %p43
    %p50 = scmp.eq.s32.totalorder %s8, 1
    %p51 = por %p49, %p50
    %p52 = scmp.ne.s32.totalorder %s44, %s47
    %p53 = scmp.eq.s32.totalorder %s8, 0
    %p54 = por %p52, %p53
    %p55 = scmp.ne.s32.totalorder %s44, %s47
    %p56 = scmp.eq.s32.totalorder %s13, 1
    %p57 = por %p55, %p56
    %p58 = scmp.ne.s32.totalorder %s47, %s48
    %p59 = scmp.eq.s32.totalorder %s13, 0
    %p60 = por %p58, %p59
    %p61 = scmp.ne.s32.totalorder %s47, %s48
    %p62 = scmp.eq.s32.totalorder %s14, 1
    %p63 = por %p61, %p62
    %p65 = scmp.ne.s32.totalorder %s48, %s64
    %p66 = scmp.eq.s32.totalorder %s14, 0
    %p67 = por %p65, %p66
    %s68 = ssub.s32 %s8, %s15
    %p69 = scmp.eq.s32.totalorder %s68, 0
    %s71 = sadd.s32 %s70, 1
    %s72 = scalar_select %p69, %s70, %s71
    %p75 = pneg %p69
    %p76 = scmp.eq.s32.totalorder %s8, 1
    %p77 = por %p75, %p76
    %p78 = scmp.ne.s32.totalorder %s70, %s73
    %p79 = scmp.eq.s32.totalorder %s8, 0
    %p80 = por %p78, %p79
    %p81 = scmp.ne.s32.totalorder %s70, %s73
    %p82 = scmp.eq.s32.totalorder %s13, 1
    %p83 = por %p81, %p82
    %p84 = scmp.ne.s32.totalorder %s73, %s74
    %p85 = scmp.eq.s32.totalorder %s13, 0
    %p86 = por %p84, %p85
    %p87 = scmp.ne.s32.totalorder %s73, %s74
    %p88 = scmp.eq.s32.totalorder %s14, 1
    %p89 = por %p87, %p88
    %p91 = scmp.ne.s32.totalorder %s74, %s90
    %p92 = scmp.eq.s32.totalorder %s14, 0
    %p93 = por %p91, %p92
    %p94 = scmp.le.s32.totalorder 1, %s8
    %p95 = scmp.lt.s32.totalorder %s8, 3
    %p96 = pnand %p94, %p95
    %p97 = pneg %p96
    // Predicated region
    $region9: #{_sor_values.1} parent=5 // pred_check
      _
    $region10: #{_sor_values.1} parent=5 // pred_check_branch
      %99 = sbr.rel (%p96) target = $region12
    $region11: #{_sor_values.1} parent=5 // pred_region
      %s100 = ssub.s32 %s8, 1
    $region12: #{_sor_values.1} parent=5 // pred_fallthru
      _
    %p101 = scmp.lt.s32.totalorder %s8, 2
    // Predicated region
    $region13: #{_sor_values.1} parent=5 // pred_check
      %p102 = pneg %p101
    $region14: #{_sor_values.1} parent=5 // pred_check_branch
      %104 = sbr.rel (%p102) target = $region16
    $region15: #{_sor_values.1} parent=5 // pred_region
      // Predicated region
      $region17: #{_sor_values.1} parent=15 // pred_check
        %p105 = pneg %p28
      $region18: #{_sor_values.1} parent=15 // pred_check_branch
        %107 = sbr.rel (%p105) target = $region20
      $region19: #{_sor_values.1} parent=15 // pred_region
        %p108 = scmp.lt.s32.totalorder %s8, 1
        %s109 = scalar_select %p108, %s8, 1
        %s110 = smul.addr %s109, 16
        %s111 = smul.addr %s110, 8
        %s112 = scalar_lea.vmem %s0, %s111
      $region20: #{_sor_values.1} parent=15 // pred_fallthru
        _
      // Predicated region
      $region21: #{_sor_values.1} parent=15 // pred_check
        %p113 = pneg %p54
      $region22: #{_sor_values.1} parent=15 // pred_check_branch
        %115 = sbr.rel (%p113) target = $region24
      $region23: #{_sor_values.1} parent=15 // pred_region
        %p116 = scmp.lt.s32.totalorder %s8, 1
        %s117 = scalar_select %p116, %s8, 1
        %s118 = smul.addr %s117, 4
        %s119 = scalar_lea.vmem %s1, %s118
      $region24: #{_sor_values.1} parent=15 // pred_fallthru
        _
    $region16: #{_sor_values.1} parent=5 // pred_fallthru
      _
    %p120 = scmp.le.s32.totalorder 1, %s8
    %p121 = scmp.lt.s32.totalorder %s8, 3
    %p122 = pnand %p120, %p121
    %p123 = pneg %p122
    // Predicated region
    $region25: #{_sor_values.1} parent=5 // pred_check
      _
    $region26: #{_sor_values.1} parent=5 // pred_check_branch
      %125 = sbr.rel (%p122) target = $region28
    $region27: #{_sor_values.1} parent=5 // pred_region
      %s126 = ssub.s32 %s8, 1
      %p127 = scmp.lt.s32.totalorder %s13, 1
      %s128 = scalar_select %p127, %s13, 1
      %s129 = smul.addr %s128, 16
      %s130 = smul.addr %s129, 8
      %s131 = scalar_lea.vmem %s0, %s130
      %p132 = pneg %p34
      %p133 = pneg %p31
      %p134 = scmp.lt.s32.totalorder %s13, 1
      %s135 = scalar_select %p134, %s13, 1
      %s136 = smul.addr %s135, 4
      %s137 = scalar_lea.vmem %s1, %s136
      %p138 = pneg %p60
      %p139 = pneg %p57
      %p140 = pneg %p86
      %p141 = pneg %p83
      %p142 = scmp.lt.s32.totalorder %s13, 1
      %s143 = scalar_select %p142, %s13, 1
      %s144 = scalar_lea.vmem %s2, %s143
      %p145 = scmp.lt.s32.totalorder %s13, 1
      %s146 = scalar_select %p145, %s13, 1
      %s147 = smul.addr %s146, 16
      %s148 = smul.addr %s147, 8
      %s149 = scalar_lea.vmem %s0, %s148
      %p150 = scmp.lt.s32.totalorder %s13, 1
      %s151 = scalar_select %p150, %s13, 1
      %s152 = smul.addr %s151, 4
      %s153 = scalar_lea.vmem %s1, %s152
      %p154 = scmp.lt.s32.totalorder %s13, 1
      %s155 = scalar_select %p154, %s13, 1
      %s156 = scalar_lea.vmem %s2, %s155
      %v157 = vlaneseq
      %v158 = vand.u32 %v157, 127
      %v159 = vlaneseq
      %v160 = vshrl.u32 %v159, 7
      %v161 = vadd.s32 %v160, 8
      %v162 = vadd.s32 %v160, 16
      %v163 = vadd.s32 %v160, 24
      %v164 = vadd.s32 %v160, 32
      %v165 = vadd.s32 %v160, 40
      %v166 = vadd.s32 %v160, 48
      %v167 = vadd.s32 %v160, 56
      %v168 = vadd.s32 %v160, 64
      %v169 = vadd.s32 %v160, 72
      %v170 = vadd.s32 %v160, 80
      %v171 = vadd.s32 %v160, 88
      %v172 = vadd.s32 %v160, 96
      %v173 = vadd.s32 %v160, 104
      %v174 = vadd.s32 %v160, 112
      %v175 = vadd.s32 %v160, 120
      %v176 = vld [vmem:[%s149] sm:$0xff]
      %v177 = vld [vmem:[%s149 + $0x8] sm:$0xff]
      %v178 = vld [vmem:[%s149 + $0x10] sm:$0xff]
      %v179 = vld [vmem:[%s149 + $0x18] sm:$0xff]
      %v180 = vld [vmem:[%s149 + $0x20] sm:$0xff]
      %v181 = vld [vmem:[%s149 + $0x28] sm:$0xff]
      %v182 = vld [vmem:[%s149 + $0x30] sm:$0xff]
      %v183 = vld [vmem:[%s149 + $0x38] sm:$0xff]
      %v184 = vld [vmem:[%s149 + $0x40] sm:$0xff]
      %v185 = vld [vmem:[%s149 + $0x48] sm:$0xff]
      %v186 = vld [vmem:[%s149 + $0x50] sm:$0xff]
      %v187 = vld [vmem:[%s149 + $0x58] sm:$0xff]
      %v188 = vld [vmem:[%s149 + $0x60] sm:$0xff]
      %v189 = vld [vmem:[%s149 + $0x68] sm:$0xff]
      %v190 = vld [vmem:[%s149 + $0x70] sm:$0xff]
      %v191 = vld [vmem:[%s149 + $0x78] sm:$0xff]
      %v192 = vld [vmem:[%s153] sm:$0x1]
      %194 = vset.pattern.permute.xlu0 0
      %195 = vperm.xlu0 %194, %v176
      %v196 = vpop.permute.xlu0 %195
      %199 = vset.pattern.permute.xlu0 0
      %200 = vperm.xlu0 %199, %v177
      %v201 = vpop.permute.xlu0 %200
      %204 = vset.pattern.permute.xlu0 0
      %205 = vperm.xlu0 %204, %v178
      %v206 = vpop.permute.xlu0 %205
      %209 = vset.pattern.permute.xlu0 0
      %210 = vperm.xlu0 %209, %v179
      %v211 = vpop.permute.xlu0 %210
      %214 = vset.pattern.permute.xlu0 0
      %215 = vperm.xlu0 %214, %v180
      %v216 = vpop.permute.xlu0 %215
      %219 = vset.pattern.permute.xlu0 0
      %220 = vperm.xlu0 %219, %v181
      %v221 = vpop.permute.xlu0 %220
      %224 = vset.pattern.permute.xlu0 0
      %225 = vperm.xlu0 %224, %v182
      %v226 = vpop.permute.xlu0 %225
      %229 = vset.pattern.permute.xlu0 0
      %230 = vperm.xlu0 %229, %v183
      %v231 = vpop.permute.xlu0 %230
      %234 = vset.pattern.permute.xlu0 0
      %235 = vperm.xlu0 %234, %v184
      %v236 = vpop.permute.xlu0 %235
      %239 = vset.pattern.permute.xlu0 0
      %240 = vperm.xlu0 %239, %v185
      %v241 = vpop.permute.xlu0 %240
      %244 = vset.pattern.permute.xlu0 0
      %245 = vperm.xlu0 %244, %v186
      %v246 = vpop.permute.xlu0 %245
      %249 = vset.pattern.permute.xlu0 0
      %250 = vperm.xlu0 %249, %v187
      %v251 = vpop.permute.xlu0 %250
      %254 = vset.pattern.permute.xlu0 0
      %255 = vperm.xlu0 %254, %v188
      %v256 = vpop.permute.xlu0 %255
      %259 = vset.pattern.permute.xlu0 0
      %260 = vperm.xlu0 %259, %v189
      %v261 = vpop.permute.xlu0 %260
      %264 = vset.pattern.permute.xlu0 0
      %265 = vperm.xlu0 %264, %v190
      %v266 = vpop.permute.xlu0 %265
      %269 = vset.pattern.permute.xlu0 0
      %270 = vperm.xlu0 %269, %v191
      %v271 = vpop.permute.xlu0 %270
      %v273 = vlaneseq
      %v274 = vshrl.u32 %v273, 7
      %v275 = vsub.s32 0, %v274
      %v276 = vrot.slane %v192, %v275
      %v277 = vsub.f32 %v196, %v276
      %v278 = vsub.f32 %v201, %v276
      %v279 = vsub.f32 %v206, %v276
      %v280 = vsub.f32 %v211, %v276
      %v281 = vsub.f32 %v216, %v276
      %v282 = vsub.f32 %v221, %v276
      %v283 = vsub.f32 %v226, %v276
      %v284 = vsub.f32 %v231, %v276
      %v285 = vsub.f32 %v236, %v276
      %v286 = vsub.f32 %v241, %v276
      %v287 = vsub.f32 %v246, %v276
      %v288 = vsub.f32 %v251, %v276
      %v289 = vsub.f32 %v256, %v276
      %v290 = vsub.f32 %v261, %v276
      %v291 = vsub.f32 %v266, %v276
      %v292 = vsub.f32 %v271, %v276
      %v293 = vmul.f32 %v277, %v277
      %v294 = vmul.f32 %v278, %v278
      %v295 = vmul.f32 %v279, %v279
      %v296 = vmul.f32 %v280, %v280
      %v297 = vmul.f32 %v281, %v281
      %v298 = vmul.f32 %v282, %v282
      %v299 = vmul.f32 %v283, %v283
      %v300 = vmul.f32 %v284, %v284
      %v301 = vmul.f32 %v285, %v285
      %v302 = vmul.f32 %v286, %v286
      %v303 = vmul.f32 %v287, %v287
      %v304 = vmul.f32 %v288, %v288
      %v305 = vmul.f32 %v289, %v289
      %v306 = vmul.f32 %v290, %v290
      %v307 = vmul.f32 %v291, %v291
      %v308 = vmul.f32 %v292, %v292
      %v309 = vld [vmem:[%s153 + $0x1] sm:$0x1]
      %310 = vset.pattern.permute.xlu0 1
      %311 = vperm.xlu0 %310, %v176
      %v312 = vpop.permute.xlu0 %311
      %314 = vset.pattern.permute.xlu0 1
      %315 = vperm.xlu0 %314, %v177
      %v316 = vpop.permute.xlu0 %315
      %318 = vset.pattern.permute.xlu0 1
      %319 = vperm.xlu0 %318, %v178
      %v320 = vpop.permute.xlu0 %319
      %322 = vset.pattern.permute.xlu0 1
      %323 = vperm.xlu0 %322, %v179
      %v324 = vpop.permute.xlu0 %323
      %326 = vset.pattern.permute.xlu0 1
      %327 = vperm.xlu0 %326, %v180
      %v328 = vpop.permute.xlu0 %327
      %330 = vset.pattern.permute.xlu0 1
      %331 = vperm.xlu0 %330, %v181
      %v332 = vpop.permute.xlu0 %331
      %334 = vset.pattern.permute.xlu0 1
      %335 = vperm.xlu0 %334, %v182
      %v336 = vpop.permute.xlu0 %335
      %338 = vset.pattern.permute.xlu0 1
      %339 = vperm.xlu0 %338, %v183
      %v340 = vpop.permute.xlu0 %339
      %342 = vset.pattern.permute.xlu0 1
      %343 = vperm.xlu0 %342, %v184
      %v344 = vpop.permute.xlu0 %343
      %346 = vset.pattern.permute.xlu0 1
      %347 = vperm.xlu0 %346, %v185
      %v348 = vpop.permute.xlu0 %347
      %350 = vset.pattern.permute.xlu0 1
      %351 = vperm.xlu0 %350, %v186
      %v352 = vpop.permute.xlu0 %351
      %354 = vset.pattern.permute.xlu0 1
      %355 = vperm.xlu0 %354, %v187
      %v356 = vpop.permute.xlu0 %355
      %358 = vset.pattern.permute.xlu0 1
      %359 = vperm.xlu0 %358, %v188
      %v360 = vpop.permute.xlu0 %359
      %362 = vset.pattern.permute.xlu0 1
      %363 = vperm.xlu0 %362, %v189
      %v364 = vpop.permute.xlu0 %363
      %366 = vset.pattern.permute.xlu0 1
      %367 = vperm.xlu0 %366, %v190
      %v368 = vpop.permute.xlu0 %367
      %370 = vset.pattern.permute.xlu0 1
      %371 = vperm.xlu0 %370, %v191
      %v372 = vpop.permute.xlu0 %371
      %v374 = vlaneseq
      %v375 = vshrl.u32 %v374, 7
      %v376 = vsub.s32 0, %v375
      %v377 = vrot.slane %v309, %v376
      %v378 = vsub.f32 %v312, %v377
      %v379 = vsub.f32 %v316, %v377
      %v380 = vsub.f32 %v320, %v377
      %v381 = vsub.f32 %v324, %v377
      %v382 = vsub.f32 %v328, %v377
      %v383 = vsub.f32 %v332, %v377
      %v384 = vsub.f32 %v336, %v377
      %v385 = vsub.f32 %v340, %v377
      %v386 = vsub.f32 %v344, %v377
      %v387 = vsub.f32 %v348, %v377
      %v388 = vsub.f32 %v352, %v377
      %v389 = vsub.f32 %v356, %v377
      %v390 = vsub.f32 %v360, %v377
      %v391 = vsub.f32 %v364, %v377
      %v392 = vsub.f32 %v368, %v377
      %v393 = vsub.f32 %v372, %v377
      %v394 = vmul.f32 %v378, %v378
      %v395 = vmul.f32 %v379, %v379
      %v396 = vmul.f32 %v380, %v380
      %v397 = vmul.f32 %v381, %v381
      %v398 = vmul.f32 %v382, %v382
      %v399 = vmul.f32 %v383, %v383
      %v400 = vmul.f32 %v384, %v384
      %v401 = vmul.f32 %v385, %v385
      %v402 = vmul.f32 %v386, %v386
      %v403 = vmul.f32 %v387, %v387
      %v404 = vmul.f32 %v388, %v388
      %v405 = vmul.f32 %v389, %v389
      %v406 = vmul.f32 %v390, %v390
      %v407 = vmul.f32 %v391, %v391
      %v408 = vmul.f32 %v392, %v392
      %v409 = vmul.f32 %v393, %v393
      %v410 = vadd.f32 %v293, %v394
      %v411 = vadd.f32 %v294, %v395
      %v412 = vadd.f32 %v295, %v396
      %v413 = vadd.f32 %v296, %v397
      %v414 = vadd.f32 %v297, %v398
      %v415 = vadd.f32 %v298, %v399
      %v416 = vadd.f32 %v299, %v400
      %v417 = vadd.f32 %v300, %v401
      %v418 = vadd.f32 %v301, %v402
      %v419 = vadd.f32 %v302, %v403
      %v420 = vadd.f32 %v303, %v404
      %v421 = vadd.f32 %v304, %v405
      %v422 = vadd.f32 %v305, %v406
      %v423 = vadd.f32 %v306, %v407
      %v424 = vadd.f32 %v307, %v408
      %v425 = vadd.f32 %v308, %v409
      %v426 = vld [vmem:[%s153 + $0x2] sm:$0x1]
      %427 = vset.pattern.permute.xlu0 2
      %428 = vperm.xlu0 %427, %v176
      %v429 = vpop.permute.xlu0 %428
      %431 = vset.pattern.permute.xlu0 2
      %432 = vperm.xlu0 %431, %v177
      %v433 = vpop.permute.xlu0 %432
      %435 = vset.pattern.permute.xlu0 2
      %436 = vperm.xlu0 %435, %v178
      %v437 = vpop.permute.xlu0 %436
      %439 = vset.pattern.permute.xlu0 2
      %440 = vperm.xlu0 %439, %v179
      %v441 = vpop.permute.xlu0 %440
      %443 = vset.pattern.permute.xlu0 2
      %444 = vperm.xlu0 %443, %v180
      %v445 = vpop.permute.xlu0 %444
      %447 = vset.pattern.permute.xlu0 2
      %448 = vperm.xlu0 %447, %v181
      %v449 = vpop.permute.xlu0 %448
      %451 = vset.pattern.permute.xlu0 2
      %452 = vperm.xlu0 %451, %v182
      %v453 = vpop.permute.xlu0 %452
      %455 = vset.pattern.permute.xlu0 2
      %456 = vperm.xlu0 %455, %v183
      %v457 = vpop.permute.xlu0 %456
      %459 = vset.pattern.permute.xlu0 2
      %460 = vperm.xlu0 %459, %v184
      %v461 = vpop.permute.xlu0 %460
      %463 = vset.pattern.permute.xlu0 2
      %464 = vperm.xlu0 %463, %v185
      %v465 = vpop.permute.xlu0 %464
      %467 = vset.pattern.permute.xlu0 2
      %468 = vperm.xlu0 %467, %v186
      %v469 = vpop.permute.xlu0 %468
      %471 = vset.pattern.permute.xlu0 2
      %472 = vperm.xlu0 %471, %v187
      %v473 = vpop.permute.xlu0 %472
      %475 = vset.pattern.permute.xlu0 2
      %476 = vperm.xlu0 %475, %v188
      %v477 = vpop.permute.xlu0 %476
      %479 = vset.pattern.permute.xlu0 2
      %480 = vperm.xlu0 %479, %v189
      %v481 = vpop.permute.xlu0 %480
      %483 = vset.pattern.permute.xlu0 2
      %484 = vperm.xlu0 %483, %v190
      %v485 = vpop.permute.xlu0 %484
      %487 = vset.pattern.permute.xlu0 2
      %488 = vperm.xlu0 %487, %v191
      %v489 = vpop.permute.xlu0 %488
      %v491 = vlaneseq
      %v492 = vshrl.u32 %v491, 7
      %v493 = vsub.s32 0, %v492
      %v494 = vrot.slane %v426, %v493
      %v495 = vsub.f32 %v429, %v494
      %v496 = vsub.f32 %v433, %v494
      %v497 = vsub.f32 %v437, %v494
      %v498 = vsub.f32 %v441, %v494
      %v499 = vsub.f32 %v445, %v494
      %v500 = vsub.f32 %v449, %v494
      %v501 = vsub.f32 %v453, %v494
      %v502 = vsub.f32 %v457, %v494
      %v503 = vsub.f32 %v461, %v494
      %v504 = vsub.f32 %v465, %v494
      %v505 = vsub.f32 %v469, %v494
      %v506 = vsub.f32 %v473, %v494
      %v507 = vsub.f32 %v477, %v494
      %v508 = vsub.f32 %v481, %v494
      %v509 = vsub.f32 %v485, %v494
      %v510 = vsub.f32 %v489, %v494
      %v511 = vmul.f32 %v495, %v495
      %v512 = vmul.f32 %v496, %v496
      %v513 = vmul.f32 %v497, %v497
      %v514 = vmul.f32 %v498, %v498
      %v515 = vmul.f32 %v499, %v499
      %v516 = vmul.f32 %v500, %v500
      %v517 = vmul.f32 %v501, %v501
      %v518 = vmul.f32 %v502, %v502
      %v519 = vmul.f32 %v503, %v503
      %v520 = vmul.f32 %v504, %v504
      %v521 = vmul.f32 %v505, %v505
      %v522 = vmul.f32 %v506, %v506
      %v523 = vmul.f32 %v507, %v507
      %v524 = vmul.f32 %v508, %v508
      %v525 = vmul.f32 %v509, %v509
      %v526 = vmul.f32 %v510, %v510
      %v527 = vadd.f32 %v410, %v511
      %v528 = vadd.f32 %v411, %v512
      %v529 = vadd.f32 %v412, %v513
      %v530 = vadd.f32 %v413, %v514
      %v531 = vadd.f32 %v414, %v515
      %v532 = vadd.f32 %v415, %v516
      %v533 = vadd.f32 %v416, %v517
      %v534 = vadd.f32 %v417, %v518
      %v535 = vadd.f32 %v418, %v519
      %v536 = vadd.f32 %v419, %v520
      %v537 = vadd.f32 %v420, %v521
      %v538 = vadd.f32 %v421, %v522
      %v539 = vadd.f32 %v422, %v523
      %v540 = vadd.f32 %v423, %v524
      %v541 = vadd.f32 %v424, %v525
      %v542 = vadd.f32 %v425, %v526
      %vm543 = vcmp.eq.s32.totalorder %v160, %v158
      %vm544 = vcmp.eq.s32.totalorder %v161, %v158
      %vm545 = vcmp.eq.s32.totalorder %v162, %v158
      %vm546 = vcmp.eq.s32.totalorder %v163, %v158
      %vm547 = vcmp.eq.s32.totalorder %v164, %v158
      %vm548 = vcmp.eq.s32.totalorder %v165, %v158
      %vm549 = vcmp.eq.s32.totalorder %v166, %v158
      %vm550 = vcmp.eq.s32.totalorder %v167, %v158
      %vm551 = vcmp.eq.s32.totalorder %v168, %v158
      %vm552 = vcmp.eq.s32.totalorder %v169, %v158
      %vm553 = vcmp.eq.s32.totalorder %v170, %v158
      %vm554 = vcmp.eq.s32.totalorder %v171, %v158
      %vm555 = vcmp.eq.s32.totalorder %v172, %v158
      %vm556 = vcmp.eq.s32.totalorder %v173, %v158
      %vm557 = vcmp.eq.s32.totalorder %v174, %v158
      %vm558 = vcmp.eq.s32.totalorder %v175, %v158
      %v559 = vsel %vm543, inf, %v527
      %v560 = vsel %vm544, inf, %v528
      %v561 = vsel %vm545, inf, %v529
      %v562 = vsel %vm546, inf, %v530
      %v563 = vsel %vm547, inf, %v531
      %v564 = vsel %vm548, inf, %v532
      %v565 = vsel %vm549, inf, %v533
      %v566 = vsel %vm550, inf, %v534
      %v567 = vsel %vm551, inf, %v535
      %v568 = vsel %vm552, inf, %v536
      %v569 = vsel %vm553, inf, %v537
      %v570 = vsel %vm554, inf, %v538
      %v571 = vsel %vm555, inf, %v539
      %v572 = vsel %vm556, inf, %v540
      %v573 = vsel %vm557, inf, %v541
      %v574 = vsel %vm558, inf, %v542
      %vm575 = vcmp.ge.s32.totalorder %v160, 64
      %vm576 = vcmp.ge.s32.totalorder %v161, 64
      %vm577 = vcmp.ge.s32.totalorder %v162, 64
      %vm578 = vcmp.ge.s32.totalorder %v163, 64
      %vm579 = vcmp.ge.s32.totalorder %v164, 64
      %vm580 = vcmp.ge.s32.totalorder %v165, 64
      %vm581 = vcmp.ge.s32.totalorder %v166, 64
      %vm582 = vcmp.ge.s32.totalorder %v167, 64
      %vm583 = vcmp.ge.s32.totalorder %v168, 64
      %vm584 = vcmp.ge.s32.totalorder %v169, 64
      %vm585 = vcmp.ge.s32.totalorder %v170, 64
      %vm586 = vcmp.ge.s32.totalorder %v171, 64
      %vm587 = vcmp.ge.s32.totalorder %v172, 64
      %vm588 = vcmp.ge.s32.totalorder %v173, 64
      %vm589 = vcmp.ge.s32.totalorder %v174, 64
      %vm590 = vcmp.ge.s32.totalorder %v175, 64
      %v591 = vsel %vm575, 1, 0
      %v592 = vsel %vm576, 1, 0
      %v593 = vsel %vm577, 1, 0
      %v594 = vsel %vm578, 1, 0
      %v595 = vsel %vm579, 1, 0
      %v596 = vsel %vm580, 1, 0
      %v597 = vsel %vm581, 1, 0
      %v598 = vsel %vm582, 1, 0
      %v599 = vsel %vm583, 1, 0
      %v600 = vsel %vm584, 1, 0
      %v601 = vsel %vm585, 1, 0
      %v602 = vsel %vm586, 1, 0
      %v603 = vsel %vm587, 1, 0
      %v604 = vsel %vm588, 1, 0
      %v605 = vsel %vm589, 1, 0
      %v606 = vsel %vm590, 1, 0
      %vm607 = vcmp.eq.s32.totalorder %v591, 1
      %vm608 = vcmp.eq.s32.totalorder %v592, 1
      %vm609 = vcmp.eq.s32.totalorder %v593, 1
      %vm610 = vcmp.eq.s32.totalorder %v594, 1
      %vm611 = vcmp.eq.s32.totalorder %v595, 1
      %vm612 = vcmp.eq.s32.totalorder %v596, 1
      %vm613 = vcmp.eq.s32.totalorder %v597, 1
      %vm614 = vcmp.eq.s32.totalorder %v598, 1
      %vm615 = vcmp.eq.s32.totalorder %v599, 1
      %vm616 = vcmp.eq.s32.totalorder %v600, 1
      %vm617 = vcmp.eq.s32.totalorder %v601, 1
      %vm618 = vcmp.eq.s32.totalorder %v602, 1
      %vm619 = vcmp.eq.s32.totalorder %v603, 1
      %vm620 = vcmp.eq.s32.totalorder %v604, 1
      %vm621 = vcmp.eq.s32.totalorder %v605, 1
      %vm622 = vcmp.eq.s32.totalorder %v606, 1
      %v623 = vsel %vm607, inf, %v559
      %v624 = vsel %vm608, inf, %v560
      %v625 = vsel %vm609, inf, %v561
      %v626 = vsel %vm610, inf, %v562
      %v627 = vsel %vm611, inf, %v563
      %v628 = vsel %vm612, inf, %v564
      %v629 = vsel %vm613, inf, %v565
      %v630 = vsel %vm614, inf, %v566
      %v631 = vsel %vm615, inf, %v567
      %v632 = vsel %vm616, inf, %v568
      %v633 = vsel %vm617, inf, %v569
      %v634 = vsel %vm618, inf, %v570
      %v635 = vsel %vm619, inf, %v571
      %v636 = vsel %vm620, inf, %v572
      %v637 = vsel %vm621, inf, %v573
      %v638 = vsel %vm622, inf, %v574
      %v639 = vmin.f32 %v623, %v627
      %v640 = vmin.f32 %v624, %v628
      %v641 = vmin.f32 %v625, %v629
      %v642 = vmin.f32 %v626, %v630
      %v643 = vmin.f32 %v639, %v631
      %v644 = vmin.f32 %v640, %v632
      %v645 = vmin.f32 %v641, %v633
      %v646 = vmin.f32 %v642, %v634
      %v647 = vmin.f32 %v643, %v635
      %v648 = vmin.f32 %v644, %v636
      %v649 = vmin.f32 %v645, %v637
      %v650 = vmin.f32 %v646, %v638
      %v651 = vmin.f32 %v647, %v648
      %v652 = vmin.f32 %v649, %v650
      %v653 = vmin.f32 %v651, %v652
      %v654 = vrot.slane %v653, 4
      %v655 = vmin.f32 %v653, %v654
      %v656 = vrot.slane %v655, 2
      %v657 = vmin.f32 %v655, %v656
      %v658 = vrot.slane %v657, 1
      %v659 = vmin.f32 %v657, %v658
      %v660 = vmax.f32 %v659, inf
      %vm661 = vcmp.eq.f32.partialorder %v623, %v659
      %vm662 = vcmp.eq.f32.partialorder %v624, %v659
      %vm663 = vcmp.eq.f32.partialorder %v625, %v659
      %vm664 = vcmp.eq.f32.partialorder %v626, %v659
      %vm665 = vcmp.eq.f32.partialorder %v627, %v659
      %vm666 = vcmp.eq.f32.partialorder %v628, %v659
      %vm667 = vcmp.eq.f32.partialorder %v629, %v659
      %vm668 = vcmp.eq.f32.partialorder %v630, %v659
      %vm669 = vcmp.eq.f32.partialorder %v631, %v659
      %vm670 = vcmp.eq.f32.partialorder %v632, %v659
      %vm671 = vcmp.eq.f32.partialorder %v633, %v659
      %vm672 = vcmp.eq.f32.partialorder %v634, %v659
      %vm673 = vcmp.eq.f32.partialorder %v635, %v659
      %vm674 = vcmp.eq.f32.partialorder %v636, %v659
      %vm675 = vcmp.eq.f32.partialorder %v637, %v659
      %vm676 = vcmp.eq.f32.partialorder %v638, %v659
      %v677 = vsel %vm661, %v160, 128
      %v678 = vsel %vm662, %v161, 128
      %v679 = vsel %vm663, %v162, 128
      %v680 = vsel %vm664, %v163, 128
      %v681 = vsel %vm665, %v164, 128
      %v682 = vsel %vm666, %v165, 128
      %v683 = vsel %vm667, %v166, 128
      %v684 = vsel %vm668, %v167, 128
      %v685 = vsel %vm669, %v168, 128
      %v686 = vsel %vm670, %v169, 128
      %v687 = vsel %vm671, %v170, 128
      %v688 = vsel %vm672, %v171, 128
      %v689 = vsel %vm673, %v172, 128
      %v690 = vsel %vm674, %v173, 128
      %v691 = vsel %vm675, %v174, 128
      %v692 = vsel %vm676, %v175, 128
      %vm693 = vcmp.lt.s32.totalorder %v677, %v681
      %v694 = vsel %vm693, %v677, %v681
      %vm695 = vcmp.lt.s32.totalorder %v678, %v682
      %v696 = vsel %vm695, %v678, %v682
      %vm697 = vcmp.lt.s32.totalorder %v679, %v683
      %v698 = vsel %vm697, %v679, %v683
      %vm699 = vcmp.lt.s32.totalorder %v680, %v684
      %v700 = vsel %vm699, %v680, %v684
      %vm701 = vcmp.lt.s32.totalorder %v694, %v685
      %v702 = vsel %vm701, %v694, %v685
      %vm703 = vcmp.lt.s32.totalorder %v696, %v686
      %v704 = vsel %vm703, %v696, %v686
      %vm705 = vcmp.lt.s32.totalorder %v698, %v687
      %v706 = vsel %vm705, %v698, %v687
      %vm707 = vcmp.lt.s32.totalorder %v700, %v688
      %v708 = vsel %vm707, %v700, %v688
      %vm709 = vcmp.lt.s32.totalorder %v702, %v689
      %v710 = vsel %vm709, %v702, %v689
      %vm711 = vcmp.lt.s32.totalorder %v704, %v690
      %v712 = vsel %vm711, %v704, %v690
      %vm713 = vcmp.lt.s32.totalorder %v706, %v691
      %v714 = vsel %vm713, %v706, %v691
      %vm715 = vcmp.lt.s32.totalorder %v708, %v692
      %v716 = vsel %vm715, %v708, %v692
      %vm717 = vcmp.lt.s32.totalorder %v710, %v712
      %v718 = vsel %vm717, %v710, %v712
      %vm719 = vcmp.lt.s32.totalorder %v714, %v716
      %v720 = vsel %vm719, %v714, %v716
      %vm721 = vcmp.lt.s32.totalorder %v718, %v720
      %v722 = vsel %vm721, %v718, %v720
      %v723 = vrot.slane %v722, 4
      %vm724 = vcmp.lt.s32.totalorder %v722, %v723
      %v725 = vsel %vm724, %v722, %v723
      %v726 = vrot.slane %v725, 2
      %vm727 = vcmp.lt.s32.totalorder %v725, %v726
      %v728 = vsel %vm727, %v725, %v726
      %v729 = vrot.slane %v728, 1
      %vm730 = vcmp.lt.s32.totalorder %v728, %v729
      %v731 = vsel %vm730, %v728, %v729
      %vm732 = vcmp.eq.s32.totalorder %v160, %v731
      %vm733 = vcmp.eq.s32.totalorder %v161, %v731
      %vm734 = vcmp.eq.s32.totalorder %v162, %v731
      %vm735 = vcmp.eq.s32.totalorder %v163, %v731
      %vm736 = vcmp.eq.s32.totalorder %v164, %v731
      %vm737 = vcmp.eq.s32.totalorder %v165, %v731
      %vm738 = vcmp.eq.s32.totalorder %v166, %v731
      %vm739 = vcmp.eq.s32.totalorder %v167, %v731
      %vm740 = vcmp.eq.s32.totalorder %v168, %v731
      %vm741 = vcmp.eq.s32.totalorder %v169, %v731
      %vm742 = vcmp.eq.s32.totalorder %v170, %v731
      %vm743 = vcmp.eq.s32.totalorder %v171, %v731
      %vm744 = vcmp.eq.s32.totalorder %v172, %v731
      %vm745 = vcmp.eq.s32.totalorder %v173, %v731
      %vm746 = vcmp.eq.s32.totalorder %v174, %v731
      %vm747 = vcmp.eq.s32.totalorder %v175, %v731
      %v748 = vsel %vm732, inf, %v623
      %v749 = vsel %vm733, inf, %v624
      %v750 = vsel %vm734, inf, %v625
      %v751 = vsel %vm735, inf, %v626
      %v752 = vsel %vm736, inf, %v627
      %v753 = vsel %vm737, inf, %v628
      %v754 = vsel %vm738, inf, %v629
      %v755 = vsel %vm739, inf, %v630
      %v756 = vsel %vm740, inf, %v631
      %v757 = vsel %vm741, inf, %v632
      %v758 = vsel %vm742, inf, %v633
      %v759 = vsel %vm743, inf, %v634
      %v760 = vsel %vm744, inf, %v635
      %v761 = vsel %vm745, inf, %v636
      %v762 = vsel %vm746, inf, %v637
      %v763 = vsel %vm747, inf, %v638
      %v764 = vmin.f32 %v748, %v752
      %v765 = vmin.f32 %v749, %v753
      %v766 = vmin.f32 %v750, %v754
      %v767 = vmin.f32 %v751, %v755
      %v768 = vmin.f32 %v764, %v756
      %v769 = vmin.f32 %v765, %v757
      %v770 = vmin.f32 %v766, %v758
      %v771 = vmin.f32 %v767, %v759
      %v772 = vmin.f32 %v768, %v760
      %v773 = vmin.f32 %v769, %v761
      %v774 = vmin.f32 %v770, %v762
      %v775 = vmin.f32 %v771, %v763
      %v776 = vmin.f32 %v772, %v773
      %v777 = vmin.f32 %v774, %v775
      %v778 = vmin.f32 %v776, %v777
      %v779 = vrot.slane %v778, 4
      %v780 = vmin.f32 %v778, %v779
      %v781 = vrot.slane %v780, 2
      %v782 = vmin.f32 %v780, %v781
      %v783 = vrot.slane %v782, 1
      %v784 = vmin.f32 %v782, %v783
      %v785 = vmin.f32 %v659, %v784
      %v786 = vmax.f32 %v659, %v784
      %v787 = vmin.f32 %v660, %v786
      %v788 = vadd.f32 %v785, %v787
      %v789 = vmul.f32 %v788, 0.5
      %790 = vst [vmem:[%s156] sm:$0x1] %v789
      %p791 = scmp.lt.s32.totalorder %s13, 1
      %s792 = scalar_select %p791, %s13, 1
      %s793 = scalar_lea.vmem %s2, %s792
      // Predicated region
      $region29: #{_sor_values.1} parent=27 // pred_check
        %p794 = pneg %p83
      $region30: #{_sor_values.1} parent=27 // pred_check_branch
        %796 = sbr.rel (%p794) target = $region32
      $region31: #{_sor_values.1} parent=27 // pred_region
        _
      $region32: #{_sor_values.1} parent=27 // pred_fallthru
        _
    $region28: #{_sor_values.1} parent=5 // pred_fallthru
      _
    %p797 = scmp.le.s32.totalorder 2, %s8
    // Predicated region
    $region33: #{_sor_values.1} parent=5 // pred_check
      %p798 = pneg %p797
    $region34: #{_sor_values.1} parent=5 // pred_check_branch
      %800 = sbr.rel (%p798) target = $region36
    $region35: #{_sor_values.1} parent=5 // pred_region
      %s801 = ssub.s32 %s8, 2
      // Predicated region
      $region37: #{_sor_values.1} parent=35 // pred_check
        %p802 = pneg %p89
      $region38: #{_sor_values.1} parent=35 // pred_check_branch
        %804 = sbr.rel (%p802) target = $region40
      $region39: #{_sor_values.1} parent=35 // pred_region
        %p805 = scmp.lt.s32.totalorder %s14, 1
        %s806 = scalar_select %p805, %s14, 1
        %s807 = scalar_lea.vmem %s2, %s806
      $region40: #{_sor_values.1} parent=35 // pred_fallthru
        _
    $region36: #{_sor_values.1} parent=5 // pred_fallthru
      _
  $region6: #{_sor_values.1} parent=0 // loop_footer
    %s12 = sadd.s32 1, %s8
  $region7: #{_sor_values.1} parent=0 // loop_footer_branch
    %7 = sbr.rel target = $region3
  $region8: #{_sor_values.1} parent=0 // loop_exit
    _

</llo_original>
